<compile_context>
chip_gen: v5e
topology: v5e:2x2
jax: 0.10.0
libtpu: 0.0.40
codegen_flags: <defaults>
</compile_context>

<pallas_src>
import functools

import jax
import jax.numpy as jnp
from jax.experimental import pallas as pl
from jax.experimental.pallas import tpu as pltpu


def _round_up(x, m):
    return ((x + m - 1) // m) * m


def _vmem_limit_bytes():
    # Generation-aware scoped-VMEM limit: ~3/4 of physical, capped at 96 MiB.
    cap = 64 * 1024 * 1024
    try:
        info = pltpu.get_tpu_info()
        cap = int(getattr(info, "vmem_capacity_bytes", cap))
    except Exception:
        pass
    return max(32 * 1024 * 1024, min(cap * 3 // 4, 96 * 1024 * 1024))


def _default_tile_n(n, c, itemsize, align, vmem_limit):
    # Live set per row ≈ 2x double-buffered input slab (input dtype) + ~6
    # full-width f32 temporaries (x, xs, work, exp, compare/select temps).
    # Keep it under ~half the scoped VMEM limit so the compiler has headroom.
    per_row = 2 * itemsize * c + 6 * 4 * c
    rows = max(align, (vmem_limit // 2) // max(1, per_row))
    t = min(2048, rows, _round_up(n, align))
    return max(align, (t // align) * align)


def _custom_loss_kernel(logits_ref, tgt_ref, out_ref,
                        *, weights, n_valid, tile_n, needs_mask):
    i = pl.program_id(0)

    x = logits_ref[...].astype(jnp.float32)                # (tile_n, C) f32
    tn, c = x.shape
    tgt = tgt_ref[...]                                     # (tile_n, 1) i32
    col = jax.lax.broadcasted_iota(jnp.int32, (tn, c), 1)  # class id per lane

    # ---- log-space softmax pieces (no full-width divide) ----
    m = jnp.max(x, axis=1, keepdims=True)                  # XLU lane-max
    xs = x - m                                             # shifted logits
    log_denom = jnp.log(jnp.sum(jnp.exp(xs), axis=1, keepdims=True))  # EUP + XLU

    # Fused one-hot target extraction: one masked lane-reduce, no astype/mul,
    # and no 0*(-inf)=NaN hazard if upstream feeds -inf-masked logits.
    xs_tgt = jnp.sum(jnp.where(col == tgt, xs, 0.0), axis=1, keepdims=True)

    # ---- iterative top-k on shifted logits (softmax is monotone) ----
    k = len(weights)
    neg_inf = jnp.float32(-jnp.inf)
    zero = jnp.float32(0.0)

    # Step 0: topv == 0.0 by construction (max(x - max(x)) == 0) -> no lane-max.
    correct = (xs_tgt == zero).astype(jnp.float32)
    wsum = correct * (-log_denom) * weights[0]
    any_correct = correct
    work = xs
    if k > 1:
        work = jnp.where(work == zero, neg_inf, work)      # knock out step-0 winner

    for j in range(1, k):                                  # k tiny & static: unroll
        topv = jnp.max(work, axis=1, keepdims=True)        # one XLU lane-max/step
        correct = (xs_tgt == topv).astype(jnp.float32)
        wsum = wsum + correct * (topv - log_denom) * weights[j]
        any_correct = jnp.maximum(any_correct, correct)
        if j < k - 1:                                      # `work` dead after last step
            work = jnp.where(work == topv, neg_inf, work)

    nll = -(xs_tgt - log_denom)                            # -log p_target, per row

    # ---- mask rows beyond the true batch (only emitted when padding exists) ----
    if needs_mask:
        row = jax.lax.broadcasted_iota(jnp.int32, (tn, 1), 0) + i * tile_n
        valid = (row < n_valid).astype(jnp.float32)
        wsum = wsum * valid
        nll = nll * valid
        any_correct = any_correct * valid

    # ---- per-tile partials -> aligned (1, 8, 128) output block ----
    wsum_p = jnp.sum(wsum, axis=0, keepdims=True)          # (1, 1)
    nll_p = jnp.sum(nll, axis=0, keepdims=True)
    cnt_p = jnp.sum(any_correct, axis=0, keepdims=True)

    lane = jax.lax.broadcasted_iota(jnp.int32, (8, 128), 1)
    vals = jnp.where(lane == 0, wsum_p,
           jnp.where(lane == 1, nll_p,
           jnp.where(lane == 2, cnt_p, zero)))
    out_ref[...] = vals[None, :, :]                        # (1, 8, 128)


def custom_loss(outputs, targets, k=3, tile_n=None):
    """outputs: (N, C) logits (f32 or bf16), targets: (N,) int class ids -> scalar loss."""
    n, c = outputs.shape
    weights = tuple(float(w) for w in [1.0, 0.7, 0.5][:k])  # module's fixed buffer

    itemsize = jnp.dtype(outputs.dtype).itemsize
    align = 8 if itemsize >= 4 else (16 if itemsize == 2 else 32)  # packed sublanes
    vmem_limit = _vmem_limit_bytes()

    if tile_n is None:
        tile_n = _default_tile_n(n, c, itemsize, align, vmem_limit)
    tile_n = max(align, _round_up(int(tile_n), align))

    n_pad = _round_up(n, tile_n)
    needs_mask = n_pad != n
    if needs_mask:
        outputs = jnp.pad(outputs, ((0, n_pad - n), (0, 0)))
        targets = jnp.pad(targets, ((0, n_pad - n),))
    tgt2d = targets.astype(jnp.int32).reshape(n_pad, 1)

    n_tiles = n_pad // tile_n
    kernel = functools.partial(_custom_loss_kernel, weights=weights,
                               n_valid=n, tile_n=tile_n, needs_mask=needs_mask)

    partials = pl.pallas_call(
        kernel,
        out_shape=jax.ShapeDtypeStruct((n_tiles, 8, 128), jnp.float32),
        grid_spec=pltpu.PrefetchScalarGridSpec(
            num_scalar_prefetch=0,
            grid=(n_tiles,),
            in_specs=[
                pl.BlockSpec((tile_n, c), lambda i: (i, 0)),   # logits tile
                pl.BlockSpec((tile_n, 1), lambda i: (i, 0)),   # targets tile
            ],
            out_specs=pl.BlockSpec((1, 8, 128), lambda i: (i, 0, 0)),
        ),
        compiler_params=pltpu.CompilerParams(
            dimension_semantics=("parallel",),   # no carried state -> both TCs on v7x
            vmem_limit_bytes=vmem_limit,
        ),
        cost_estimate=pl.CostEstimate(
            flops=int(12 * n_pad * c),
            transcendentals=int(n_pad * c),
            bytes_accessed=int(n_pad * c * itemsize + n_pad * 4 + n_tiles * 8 * 128 * 4),
        ),
    )(outputs, tgt2d)

    # Tiny cross-tile reduction + global branch select in plain JAX.
    wsum_tot = jnp.sum(partials[:, 0, 0])
    nll_tot = jnp.sum(partials[:, 0, 1])
    cnt_tot = jnp.sum(partials[:, 0, 2])
    inv_n = jnp.float32(1.0 / n)
    return jnp.where(cnt_tot > 0.0, -wsum_tot * inv_n, nll_tot * inv_n)


def _ref_loss(outputs, targets, k=3):
    # pure-JAX reference mirroring the PyTorch forward
    w = jnp.array([1.0, 0.7, 0.5], dtype=jnp.float32)[:k]
    probs = jax.nn.softmax(outputs.astype(jnp.float32), axis=1)
    topk_probs, topk_idx = jax.lax.top_k(probs, k)
    correct = topk_idx == targets[:, None]
    loss_topk = -jnp.mean(jnp.sum(correct.astype(jnp.float32) * jnp.log(topk_probs) * w, axis=1))
    loss_nll = jnp.mean(-jnp.log(probs[jnp.arange(outputs.shape[0]), targets]))
    return jnp.where(jnp.any(correct), loss_topk, loss_nll)


if __name__ == "__main__":
    key = jax.random.PRNGKey(0)
    k1, k2 = jax.random.split(key)

    # Multi-tile case (N=40 -> padded to 48, grid of 3 parallel tiles) exercising
    # per-tile partial outputs, the padded-row masking and the top-k branch.
    N, C, K = 40, 32, 3
    outputs = jax.random.normal(k1, (N, C), dtype=jnp.float32)
    targets = jax.random.randint(k2, (N,), 0, C, dtype=jnp.int32)

    loss = custom_loss(outputs, targets, k=K, tile_n=16)
    jax.block_until_ready(loss)
    ref = _ref_loss(outputs, targets, k=K)
    assert jnp.allclose(loss, ref, rtol=1e-5, atol=1e-5), (loss, ref)

    # Branch where NO target is in the top-k (falls back to plain NLL),
    # using the auto-chosen tile size (single tile, no padding).
    outputs2 = jnp.tile(jnp.arange(C, dtype=jnp.float32)[None, :], (8, 1))
    targets2 = jnp.zeros((8,), dtype=jnp.int32)  # lowest-logit class, never in top-3
    loss2 = custom_loss(outputs2, targets2, k=K)
    jax.block_until_ready(loss2)
    ref2 = _ref_loss(outputs2, targets2, k=K)
    assert jnp.allclose(loss2, ref2, rtol=1e-5, atol=1e-4), (loss2, ref2)

    print("KERNEL_OK")
</pallas_src>

<mosaic_0001>
module attributes {stable_mosaic.version = 11 : i64} {
  func.func @_custom_loss_kernel(%arg0: i32, %arg1: memref<16x32xf32, #tpu.memory_space<vmem>>, %arg2: memref<16x1xi32, #tpu.memory_space<vmem>>, %arg3: memref<1x8x128xf32, #tpu.memory_space<vmem>>) attributes {dimension_semantics = [#tpu.dimension_semantics<parallel>], iteration_bounds = array<i64: 3>, scalar_prefetch = 0 : i64, scratch_operands = 0 : i64, tpu.core_type = #tpu.core_type<tc>, window_params = [{transform_indices = @transform_0, window_bounds = array<i64: 16, 32>}, {transform_indices = @transform_1, window_bounds = array<i64: 16, 1>}, {transform_indices = @transform_2, window_bounds = array<i64: 1, 8, 128>}]} {
    %c0 = arith.constant 0 : index
    %c0_0 = arith.constant 0 : index
    %0 = vector.load %arg1[%c0, %c0_0] : memref<16x32xf32, #tpu.memory_space<vmem>>, vector<16x32xf32>
    %c0_1 = arith.constant 0 : index
    %c0_2 = arith.constant 0 : index
    %1 = vector.load %arg2[%c0_1, %c0_2] : memref<16x1xi32, #tpu.memory_space<vmem>>, vector<16x1xi32>
    %2 = tpu.iota {dimensions = array<i32: 1>} : vector<16x32xi32>
    %cst = arith.constant dense<0xFF800000> : vector<16xf32>
    %3 = vector.multi_reduction <maximumf>, %0, %cst [1] : vector<16x32xf32> to vector<16xf32>
    %4 = vector.shape_cast %3 : vector<16xf32> to vector<16x1xf32>
    %5 = vector.broadcast %4 : vector<16x1xf32> to vector<16x32xf32>
    %6 = arith.subf %0, %5 : vector<16x32xf32>
    %7 = math.exp %6 : vector<16x32xf32>
    %cst_3 = arith.constant dense<0.000000e+00> : vector<16xf32>
    %8 = vector.multi_reduction <add>, %7, %cst_3 [1] : vector<16x32xf32> to vector<16xf32>
    %9 = vector.shape_cast %8 : vector<16xf32> to vector<16x1xf32>
    %10 = math.log %9 : vector<16x1xf32>
    %11 = vector.broadcast %1 : vector<16x1xi32> to vector<16x32xi32>
    %12 = arith.cmpi eq, %2, %11 : vector<16x32xi32>
    %cst_4 = arith.constant 0.000000e+00 : f32
    %13 = vector.broadcast %cst_4 : f32 to vector<16x32xf32>
    %14 = arith.select %12, %6, %13 : vector<16x32xi1>, vector<16x32xf32>
    %cst_5 = arith.constant dense<0.000000e+00> : vector<16xf32>
    %15 = vector.multi_reduction <add>, %14, %cst_5 [1] : vector<16x32xf32> to vector<16xf32>
    %16 = vector.shape_cast %15 : vector<16xf32> to vector<16x1xf32>
    %cst_6 = arith.constant 0.000000e+00 : f32
    %17 = vector.broadcast %cst_6 : f32 to vector<16x1xf32>
    %18 = arith.cmpf oeq, %16, %17 : vector<16x1xf32>
    %19 = arith.extui %18 : vector<16x1xi1> to vector<16x1xi32>
    %20 = arith.sitofp %19 : vector<16x1xi32> to vector<16x1xf32>
    %cst_7 = arith.constant 0.000000e+00 : f32
    %21 = vector.broadcast %cst_7 : f32 to vector<16x1xf32>
    %22 = arith.subf %21, %10 : vector<16x1xf32>
    %23 = arith.mulf %20, %22 : vector<16x1xf32>
    %cst_8 = arith.constant 1.000000e+00 : f32
    %24 = vector.broadcast %cst_8 : f32 to vector<16x1xf32>
    %25 = arith.mulf %23, %24 : vector<16x1xf32>
    %cst_9 = arith.constant 0.000000e+00 : f32
    %26 = vector.broadcast %cst_9 : f32 to vector<16x32xf32>
    %27 = arith.cmpf oeq, %6, %26 : vector<16x32xf32>
    %cst_10 = arith.constant 0xFF800000 : f32
    %28 = vector.broadcast %cst_10 : f32 to vector<16x32xf32>
    %29 = arith.select %27, %28, %6 : vector<16x32xi1>, vector<16x32xf32>
    %cst_11 = arith.constant dense<0xFF800000> : vector<16xf32>
    %30 = vector.multi_reduction <maximumf>, %29, %cst_11 [1] : vector<16x32xf32> to vector<16xf32>
    %31 = vector.shape_cast %30 : vector<16xf32> to vector<16x1xf32>
    %32 = arith.cmpf oeq, %16, %31 : vector<16x1xf32>
    %33 = arith.extui %32 : vector<16x1xi1> to vector<16x1xi32>
    %34 = arith.sitofp %33 : vector<16x1xi32> to vector<16x1xf32>
    %35 = arith.subf %31, %10 : vector<16x1xf32>
    %36 = arith.mulf %34, %35 : vector<16x1xf32>
    %cst_12 = arith.constant 0.699999988 : f32
    %37 = vector.broadcast %cst_12 : f32 to vector<16x1xf32>
    %38 = arith.mulf %36, %37 : vector<16x1xf32>
    %39 = arith.addf %25, %38 : vector<16x1xf32>
    %40 = arith.maximumf %20, %34 : vector<16x1xf32>
    %41 = vector.broadcast %31 : vector<16x1xf32> to vector<16x32xf32>
    %42 = arith.cmpf oeq, %29, %41 : vector<16x32xf32>
    %cst_13 = arith.constant 0xFF800000 : f32
    %43 = vector.broadcast %cst_13 : f32 to vector<16x32xf32>
    %44 = arith.select %42, %43, %29 : vector<16x32xi1>, vector<16x32xf32>
    %cst_14 = arith.constant dense<0xFF800000> : vector<16xf32>
    %45 = vector.multi_reduction <maximumf>, %44, %cst_14 [1] : vector<16x32xf32> to vector<16xf32>
    %46 = vector.shape_cast %45 : vector<16xf32> to vector<16x1xf32>
    %47 = arith.cmpf oeq, %16, %46 : vector<16x1xf32>
    %48 = arith.extui %47 : vector<16x1xi1> to vector<16x1xi32>
    %49 = arith.sitofp %48 : vector<16x1xi32> to vector<16x1xf32>
    %50 = arith.subf %46, %10 : vector<16x1xf32>
    %51 = arith.mulf %49, %50 : vector<16x1xf32>
    %cst_15 = arith.constant 5.000000e-01 : f32
    %52 = vector.broadcast %cst_15 : f32 to vector<16x1xf32>
    %53 = arith.mulf %51, %52 : vector<16x1xf32>
    %54 = arith.addf %39, %53 : vector<16x1xf32>
    %55 = arith.maximumf %40, %49 : vector<16x1xf32>
    %56 = arith.subf %16, %10 : vector<16x1xf32>
    %cst_16 = arith.constant 0.000000e+00 : f32
    %57 = vector.broadcast %cst_16 : f32 to vector<16x1xf32>
    %58 = arith.subf %57, %56 : vector<16x1xf32>
    %59 = tpu.iota {dimensions = array<i32: 0>} : vector<16x1xi32>
    %c16_i32 = arith.constant 16 : i32
    %60 = arith.muli %arg0, %c16_i32 : i32
    %61 = vector.broadcast %60 : i32 to vector<16x1xi32>
    %62 = arith.addi %59, %61 : vector<16x1xi32>
    %c40_i32 = arith.constant 40 : i32
    %63 = vector.broadcast %c40_i32 : i32 to vector<16x1xi32>
    %64 = arith.cmpi slt, %62, %63 : vector<16x1xi32>
    %65 = arith.extui %64 : vector<16x1xi1> to vector<16x1xi32>
    %66 = arith.sitofp %65 : vector<16x1xi32> to vector<16x1xf32>
    %67 = arith.mulf %54, %66 : vector<16x1xf32>
    %68 = arith.mulf %58, %66 : vector<16x1xf32>
    %69 = arith.mulf %55, %66 : vector<16x1xf32>
    %cst_17 = arith.constant dense<0.000000e+00> : vector<1xf32>
    %70 = vector.multi_reduction <add>, %67, %cst_17 [0] : vector<16x1xf32> to vector<1xf32>
    %71 = vector.shape_cast %70 : vector<1xf32> to vector<1x1xf32>
    %cst_18 = arith.constant dense<0.000000e+00> : vector<1xf32>
    %72 = vector.multi_reduction <add>, %68, %cst_18 [0] : vector<16x1xf32> to vector<1xf32>
    %73 = vector.shape_cast %72 : vector<1xf32> to vector<1x1xf32>
    %cst_19 = arith.constant dense<0.000000e+00> : vector<1xf32>
    %74 = vector.multi_reduction <add>, %69, %cst_19 [0] : vector<16x1xf32> to vector<1xf32>
    %75 = vector.shape_cast %74 : vector<1xf32> to vector<1x1xf32>
    %76 = tpu.iota {dimensions = array<i32: 1>} : vector<8x128xi32>
    %c0_i32 = arith.constant 0 : i32
    %77 = vector.broadcast %c0_i32 : i32 to vector<8x128xi32>
    %78 = arith.cmpi eq, %76, %77 : vector<8x128xi32>
    %c1_i32 = arith.constant 1 : i32
    %79 = vector.broadcast %c1_i32 : i32 to vector<8x128xi32>
    %80 = arith.cmpi eq, %76, %79 : vector<8x128xi32>
    %c2_i32 = arith.constant 2 : i32
    %81 = vector.broadcast %c2_i32 : i32 to vector<8x128xi32>
    %82 = arith.cmpi eq, %76, %81 : vector<8x128xi32>
    %cst_20 = arith.constant 0.000000e+00 : f32
    %83 = vector.shape_cast %75 : vector<1x1xf32> to vector<1x1xf32>
    %84 = vector.broadcast %83 : vector<1x1xf32> to vector<8x128xf32>
    %85 = vector.broadcast %cst_20 : f32 to vector<8x128xf32>
    %86 = arith.select %82, %84, %85 : vector<8x128xi1>, vector<8x128xf32>
    %87 = vector.shape_cast %73 : vector<1x1xf32> to vector<1x1xf32>
    %88 = vector.broadcast %87 : vector<1x1xf32> to vector<8x128xf32>
    %89 = arith.select %80, %88, %86 : vector<8x128xi1>, vector<8x128xf32>
    %90 = vector.shape_cast %71 : vector<1x1xf32> to vector<1x1xf32>
    %91 = vector.broadcast %90 : vector<1x1xf32> to vector<8x128xf32>
    %92 = arith.select %78, %91, %89 : vector<8x128xi1>, vector<8x128xf32>
    %93 = vector.shape_cast %92 : vector<8x128xf32> to vector<1x8x128xf32>
    %c0_21 = arith.constant 0 : index
    %c0_22 = arith.constant 0 : index
    %c0_23 = arith.constant 0 : index
    %94 = vector.load %arg3[%c0_21, %c0_22, %c0_23] : memref<1x8x128xf32, #tpu.memory_space<vmem>>, vector<1x8x128xf32>
    tpu.vector_store %arg3[%c0_21, %c0_22, %c0_23], %93 {strides = array<i32>} : memref<1x8x128xf32, #tpu.memory_space<vmem>>, vector<1x8x128xf32>,
    return
  }
  func.func @transform_0(%arg0: i32) -> (i32, i32) {
    %c0_i32 = arith.constant 0 : i32
    %c0_i32_0 = arith.constant 0 : i32
    return %arg0, %c0_i32 : i32, i32
  }
  func.func @transform_1(%arg0: i32) -> (i32, i32) {
    %c0_i32 = arith.constant 0 : i32
    %c0_i32_0 = arith.constant 0 : i32
    return %arg0, %c0_i32 : i32, i32
  }
  func.func @transform_2(%arg0: i32) -> (i32, i32, i32) {
    %c0_i32 = arith.constant 0 : i32
    %c0_i32_0 = arith.constant 0 : i32
    %c0_i32_1 = arith.constant 0 : i32
    return %arg0, %c0_i32, %c0_i32_0 : i32, i32, i32
  }
}

</mosaic_0001>

<llo_original>
// kernel: tpu_custom_call.1
$region0: #{tpu_custom_call.1}
  #allocation0 [shape = 'u32[]', space=smem, size = 0x4, offset = 0x4, fixed_abs, tag = 'smem constant byte address 0x4 - core index']
  #allocation1 [shape = 'u32[72,128]{1,0:T(1,128)}', space=vmem, size = 0x9000, scoped, tag = 'internal scratch']
  %s0 = inlined_call_operand.vmem [shape: f32[48,32], index: 0, kind: input, shape index: {}]
  %s1 = inlined_call_operand.vmem [shape: s32[48,1], index: 1, kind: input, shape index: {}]
  %s2 = inlined_call_operand.hbm [shape: f32[3,8,128], index: 2, kind: output, shape index: {}]
  %s3 = sld [smem:[#allocation0]]
  $region41: #{tpu_custom_call.1} parent=0
    _
  %s5 = ssub.s32 1, %s3
  %s6 = scalar_select 0, %s5, %s3
  $region1: #{tpu_custom_call.1} parent=0
    #allocation2 [shape = 'u8[8192]{0}', space=vmem, size = 0x2000, scoped, tag = 'output window, operand 0']
    #allocation3 [shape = 's32[2]{0}', space=sflag, size = 0x8, scoped, tag = 'scoped memory for tpu_custom_call.1']
    %7 = vsyncpa [#allocation3], 0
    %s8 = scalar_lea.sflag [#allocation3], 1
    %9 = vsyncpa %s8, 0
    loop: start=0, step=1, limit=5
    $region2: #{tpu_custom_call.1} parent=1 // loop_pre_header
      _
    $region3: #{tpu_custom_call.1} parent=1 // loop_header
      %s11 = sphi 0, %s15
      %p12 = scmp.ge.s32.totalorder %s11, 5
      %s21 = sphi 0, %s23
      %s24 = sphi 0, %s21
      %s25 = sphi 0, %s24
      %s41 = sphi 0, %s25
      %s47 = sphi 0, %s49
      %s50 = sphi 0, %s47
      %s51 = sphi 0, %s50
      %s67 = sphi 0, %s51
      %s73 = sphi 0, %s75
      %s76 = sphi 0, %s73
      %s77 = sphi 0, %s76
      %s93 = sphi 0, %s77
    $region4: #{tpu_custom_call.1} parent=1 // loop_header_branch
      %14 = sbr.rel (%p12) target = $region8
    $region5: #{tpu_custom_call.1} parent=1 // loop_body
      %s16 = ssub.s32 %s11, 1
      %s17 = ssub.s32 %s11, 2
      %s18 = sadd.s32 %s11, 1
      %s19 = ssub.s32 %s11, %s18
      %p20 = scmp.eq.s32.totalorder %s19, 0
      %s22 = sadd.s32 %s21, 1
      %s23 = scalar_select %p20, %s21, %s22
      %p26 = pneg %p20
      %p27 = scmp.eq.s32.totalorder %s11, 2
      %p28 = por %p26, %p27
      %p29 = scmp.ne.s32.totalorder %s21, %s24
      %p30 = scmp.eq.s32.totalorder %s11, 0
      %p31 = por %p29, %p30
      %p32 = scmp.ne.s32.totalorder %s21, %s24
      %p33 = scmp.eq.s32.totalorder %s16, 2
      %p34 = por %p32, %p33
      %p35 = scmp.ne.s32.totalorder %s24, %s25
      %p36 = scmp.eq.s32.totalorder %s16, 0
      %p37 = por %p35, %p36
      %p38 = scmp.ne.s32.totalorder %s24, %s25
      %p39 = scmp.eq.s32.totalorder %s17, 2
      %p40 = por %p38, %p39
      %p42 = scmp.ne.s32.totalorder %s25, %s41
      %p43 = scmp.eq.s32.totalorder %s17, 0
      %p44 = por %p42, %p43
      %s45 = ssub.s32 %s11, %s18
      %p46 = scmp.eq.s32.totalorder %s45, 0
      %s48 = sadd.s32 %s47, 1
      %s49 = scalar_select %p46, %s47, %s48
      %p52 = pneg %p46
      %p53 = scmp.eq.s32.totalorder %s11, 2
      %p54 = por %p52, %p53
      %p55 = scmp.ne.s32.totalorder %s47, %s50
      %p56 = scmp.eq.s32.totalorder %s11, 0
      %p57 = por %p55, %p56
      %p58 = scmp.ne.s32.totalorder %s47, %s50
      %p59 = scmp.eq.s32.totalorder %s16, 2
      %p60 = por %p58, %p59
      %p61 = scmp.ne.s32.totalorder %s50, %s51
      %p62 = scmp.eq.s32.totalorder %s16, 0
      %p63 = por %p61, %p62
      %p64 = scmp.ne.s32.totalorder %s50, %s51
      %p65 = scmp.eq.s32.totalorder %s17, 2
      %p66 = por %p64, %p65
      %p68 = scmp.ne.s32.totalorder %s51, %s67
      %p69 = scmp.eq.s32.totalorder %s17, 0
      %p70 = por %p68, %p69
      %s71 = ssub.s32 %s11, %s18
      %p72 = scmp.eq.s32.totalorder %s71, 0
      %s74 = sadd.s32 %s73, 1
      %s75 = scalar_select %p72, %s73, %s74
      %p78 = pneg %p72
      %p79 = scmp.eq.s32.totalorder %s11, 2
      %p80 = por %p78, %p79
      %p81 = scmp.ne.s32.totalorder %s73, %s76
      %p82 = scmp.eq.s32.totalorder %s11, 0
      %p83 = por %p81, %p82
      %p84 = scmp.ne.s32.totalorder %s73, %s76
      %p85 = scmp.eq.s32.totalorder %s16, 2
      %p86 = por %p84, %p85
      %p87 = scmp.ne.s32.totalorder %s76, %s77
      %p88 = scmp.eq.s32.totalorder %s16, 0
      %p89 = por %p87, %p88
      %p90 = scmp.ne.s32.totalorder %s76, %s77
      %p91 = scmp.eq.s32.totalorder %s17, 2
      %p92 = por %p90, %p91
      %p94 = scmp.ne.s32.totalorder %s77, %s93
      %p95 = scmp.eq.s32.totalorder %s17, 0
      %p96 = por %p94, %p95
      %p97 = scmp.le.s32.totalorder 1, %s11
      %p98 = scmp.lt.s32.totalorder %s11, 4
      %p99 = pnand %p97, %p98
      %p100 = pneg %p99
      // Predicated region
      $region9: #{tpu_custom_call.1} parent=5 // pred_check
        _
      $region10: #{tpu_custom_call.1} parent=5 // pred_check_branch
        %102 = sbr.rel (%p99) target = $region12
      $region11: #{tpu_custom_call.1} parent=5 // pred_region
        %s103 = ssub.s32 %s11, 1
      $region12: #{tpu_custom_call.1} parent=5 // pred_fallthru
        _
      %p104 = scmp.lt.s32.totalorder %s11, 3
      // Predicated region
      $region13: #{tpu_custom_call.1} parent=5 // pred_check
        %p105 = pneg %p104
      $region14: #{tpu_custom_call.1} parent=5 // pred_check_branch
        %107 = sbr.rel (%p105) target = $region16
      $region15: #{tpu_custom_call.1} parent=5 // pred_region
        // Predicated region
        $region17: #{tpu_custom_call.1} parent=15 // pred_check
          %p108 = pneg %p31
        $region18: #{tpu_custom_call.1} parent=15 // pred_check_branch
          %110 = sbr.rel (%p108) target = $region20
        $region19: #{tpu_custom_call.1} parent=15 // pred_region
          %s111 = smul.u32 2, %s11
          %p112 = scmp.lt.s32.totalorder %s111, 5
          %s113 = scalar_select %p112, %s111, 5
          %s114 = smul.addr %s113, 8
          %s115 = scalar_lea.vmem %s0, %s114
          %s116 = smul.u32 2, %s11
        $region20: #{tpu_custom_call.1} parent=15 // pred_fallthru
          _
        // Predicated region
        $region21: #{tpu_custom_call.1} parent=15 // pred_check
          %p117 = pneg %p57
        $region22: #{tpu_custom_call.1} parent=15 // pred_check_branch
          %119 = sbr.rel (%p117) target = $region24
        $region23: #{tpu_custom_call.1} parent=15 // pred_region
          %s120 = smul.u32 2, %s11
          %p121 = scmp.lt.s32.totalorder %s120, 5
          %s122 = scalar_select %p121, %s120, 5
          %s123 = smul.addr %s122, 8
          %s124 = scalar_lea.vmem %s1, %s123
          %s125 = smul.u32 2, %s11
        $region24: #{tpu_custom_call.1} parent=15 // pred_fallthru
          _
      $region16: #{tpu_custom_call.1} parent=5 // pred_fallthru
        _
      %p126 = scmp.le.s32.totalorder 1, %s11
      %p127 = scmp.lt.s32.totalorder %s11, 4
      %p128 = pnand %p126, %p127
      %p129 = pneg %p128
      // Predicated region
      $region25: #{tpu_custom_call.1} parent=5 // pred_check
        _
      $region26: #{tpu_custom_call.1} parent=5 // pred_check_branch
        %131 = sbr.rel (%p128) target = $region28
      $region27: #{tpu_custom_call.1} parent=5 // pred_region
        %s132 = ssub.s32 %s11, 1
        %s133 = smul.u32 2, %s16
        %p134 = scmp.lt.s32.totalorder %s133, 5
        %s135 = scalar_select %p134, %s133, 5
        %s136 = smul.addr %s135, 8
        %s137 = scalar_lea.vmem %s0, %s136
        %p138 = pneg %p37
        %p139 = pneg %p34
        %s140 = smul.u32 2, %s16
        %p141 = scmp.lt.s32.totalorder %s140, 5
        %s142 = scalar_select %p141, %s140, 5
        %s143 = smul.addr %s142, 8
        %s144 = scalar_lea.vmem %s1, %s143
        %p145 = pneg %p63
        %p146 = pneg %p60
        %p147 = pneg %p89
        %p148 = pneg %p86
        %s149 = sand.u32 %s76, 1
        %s150 = scalar_lea.sflag [#allocation3], %s149
        %s151 = sand.u32 %s76, 1
        %s152 = smul.addr %s151, 8
        %s153 = scalar_lea.vmem [#allocation2], %s152
        %s154 = smul.u32 2, %s16
        %p155 = scmp.lt.s32.totalorder %s154, 5
        %s156 = scalar_select %p155, %s154, 5
        %s157 = smul.addr %s156, 8
        %s158 = scalar_lea.vmem %s0, %s157
        %s159 = smul.u32 2, %s16
        %s160 = smul.u32 2, %s16
        %p161 = scmp.lt.s32.totalorder %s160, 5
        %s162 = scalar_select %p161, %s160, 5
        %s163 = smul.addr %s162, 8
        %s164 = scalar_lea.vmem %s1, %s163
        %s165 = smul.u32 2, %s16
        %v166 = vld [vmem:[%s158] sm:$0xff]
        %v167 = vld [vmem:[%s158 + $0x8] sm:$0xff]
        %v168 = vld [vmem:[%s164] sm:$0xff]
        %v169 = vld [vmem:[%s164 + $0x8] sm:$0xff]
        %v170 = vlaneseq
        %v171 = vand.u32 %v170, 127
        %vm172 = vcmask 261120
        %v173 = vsel %vm172, %v166, -inf
        %174 = vmax.xlane.f32.xlu0 %v173
        %v175 = vpop.xlane.xlu0 %174
        %v176 = vsel %vm172, %v167, -inf
        %177 = vmax.xlane.f32.xlu0 %v176
        %v178 = vpop.xlane.xlu0 %177
        %v179 = vsub.f32 %v166, %v175
        %v180 = vsub.f32 %v167, %v178
        %v181 = vmul.f32 %v179, 1.442695
        %v182 = vpow.pop %v181
        %v183 = vmul.f32 %v180, 1.442695
        %v184 = vpow.pop %v183
        %v185 = vsel %vm172, %v182, 0.0
        %186 = vadd.xlane.f32.xlu0 %v185
        %v187 = vpop.xlane.xlu0 %186
        %v188 = vsel %vm172, %v184, 0.0
        %189 = vadd.xlane.f32.xlu0 %v188
        %v190 = vpop.xlane.xlu0 %189
        %v191 = vlog2.pop %v187
        %v192 = vmul.f32 %v191, 0.6931472
        %v193 = vlog2.pop %v190
        %v194 = vmul.f32 %v193, 0.6931472
        %195 = vset.pattern.permute.xlu0 0
        %196 = vperm.xlu0 %195, %v168
        %v197 = vpop.permute.xlu0 %196
        %198 = vset.pattern.permute.xlu0 0
        %199 = vperm.xlu0 %198, %v169
        %v200 = vpop.permute.xlu0 %199
        %vm201 = vcmp.eq.s32.totalorder %v171, %v197
        %vm202 = vcmp.eq.s32.totalorder %v171, %v200
        %v203 = vsel %vm201, %v179, 0.0
        %v204 = vsel %vm202, %v180, 0.0
        %v205 = vsel %vm172, %v203, 0.0
        %206 = vadd.xlane.f32.xlu0 %v205
        %v207 = vpop.xlane.xlu0 %206
        %v208 = vsel %vm172, %v204, 0.0
        %209 = vadd.xlane.f32.xlu0 %v208
        %v210 = vpop.xlane.xlu0 %209
        %vm211 = vcmp.eq.f32.partialorder %v207, 0.0
        %vm212 = vcmp.eq.f32.partialorder %v210, 0.0
        %v213 = vsel %vm211, 1, 0
        %v214 = vsel %vm212, 1, 0
        %v215 = vcvt.s32.f32 %v213
        %v216 = vcvt.s32.f32 %v214
        %v217 = vsub.f32 0.0, %v192
        %v218 = vsub.f32 0.0, %v194
        %v219 = vmul.f32 %v215, %v217
        %v220 = vmul.f32 %v216, %v218
        %vm221 = vcmp.eq.f32.partialorder %v179, 0.0
        %vm222 = vcmp.eq.f32.partialorder %v180, 0.0
        %v223 = vsel %vm221, -inf, %v179
        %v224 = vsel %vm222, -inf, %v180
        %v225 = vsel %vm172, %v223, -inf
        %226 = vmax.xlane.f32.xlu0 %v225
        %v227 = vpop.xlane.xlu0 %226
        %v228 = vsel %vm172, %v224, -inf
        %229 = vmax.xlane.f32.xlu0 %v228
        %v230 = vpop.xlane.xlu0 %229
        %vm231 = vcmp.eq.f32.partialorder %v207, %v227
        %vm232 = vcmp.eq.f32.partialorder %v210, %v230
        %v233 = vsel %vm231, 1, 0
        %v234 = vsel %vm232, 1, 0
        %v235 = vcvt.s32.f32 %v233
        %v236 = vcvt.s32.f32 %v234
        %v237 = vsub.f32 %v227, %v192
        %v238 = vsub.f32 %v230, %v194
        %v239 = vmul.f32 %v235, %v237
        %v240 = vmul.f32 %v236, %v238
        %v241 = vmul.f32 %v239, 0.7
        %v242 = vmul.f32 %v240, 0.7
        %v243 = vadd.f32 %v219, %v241
        %v244 = vadd.f32 %v220, %v242
        %v245 = vmax.f32 %v215, %v235
        %v246 = vmax.f32 %v216, %v236
        %vm247 = vcmp.eq.f32.partialorder %v223, %v227
        %vm248 = vcmp.eq.f32.partialorder %v224, %v230
        %v249 = vsel %vm247, -inf, %v223
        %v250 = vsel %vm248, -inf, %v224
        %v251 = vsel %vm172, %v249, -inf
        %252 = vmax.xlane.f32.xlu0 %v251
        %v253 = vpop.xlane.xlu0 %252
        %v254 = vsel %vm172, %v250, -inf
        %255 = vmax.xlane.f32.xlu0 %v254
        %v256 = vpop.xlane.xlu0 %255
        %vm257 = vcmp.eq.f32.partialorder %v207, %v253
        %vm258 = vcmp.eq.f32.partialorder %v210, %v256
        %v259 = vsel %vm257, 1, 0
        %v260 = vsel %vm258, 1, 0
        %v261 = vcvt.s32.f32 %v259
        %v262 = vcvt.s32.f32 %v260
        %v263 = vsub.f32 %v253, %v192
        %v264 = vsub.f32 %v256, %v194
        %v265 = vmul.f32 %v261, %v263
        %v266 = vmul.f32 %v262, %v264
        %v267 = vmul.f32 %v265, 0.5
        %v268 = vmul.f32 %v266, 0.5
        %v269 = vadd.f32 %v243, %v267
        %v270 = vadd.f32 %v244, %v268
        %v271 = vmax.f32 %v245, %v261
        %v272 = vmax.f32 %v246, %v262
        %v273 = vsub.f32 %v207, %v192
        %v274 = vsub.f32 %v210, %v194
        %v275 = vsub.f32 0.0, %v273
        %v276 = vsub.f32 0.0, %v274
        %v277 = vlaneseq
        %v278 = vshrl.u32 %v277, 7
        %v279 = vadd.s32 %v278, 8
        %s280 = smul.u32 %s16, 16
        %v281 = vstv %s280
        %v282 = vadd.s32 %v278, %v281
        %v283 = vadd.s32 %v279, %v281
        %vm284 = vcmp.lt.s32.totalorder %v282, 40
        %vm285 = vcmp.lt.s32.totalorder %v283, 40
        %v286 = vsel %vm284, 1, 0
        %v287 = vsel %vm285, 1, 0
        %v288 = vcvt.s32.f32 %v286
        %v289 = vcvt.s32.f32 %v287
        %v290 = vmul.f32 %v269, %v288
        %v291 = vmul.f32 %v270, %v289
        %v292 = vmul.f32 %v275, %v288
        %v293 = vmul.f32 %v276, %v289
        %v294 = vmul.f32 %v271, %v288
        %v295 = vmul.f32 %v272, %v289
        %v296 = vadd.f32 %v290, %v291
        %v297 = vrot.slane %v296, 4
        %v298 = vadd.f32 %v296, %v297
        %v299 = vrot.slane %v298, 2
        %v300 = vadd.f32 %v298, %v299
        %v301 = vrot.slane %v300, 1
        %v302 = vadd.f32 %v300, %v301
        %v303 = vadd.f32 %v292, %v293
        %v304 = vrot.slane %v303, 4
        %v305 = vadd.f32 %v303, %v304
        %v306 = vrot.slane %v305, 2
        %v307 = vadd.f32 %v305, %v306
        %v308 = vrot.slane %v307, 1
        %v309 = vadd.f32 %v307, %v308
        %v310 = vadd.f32 %v294, %v295
        %v311 = vrot.slane %v310, 4
        %v312 = vadd.f32 %v310, %v311
        %v313 = vrot.slane %v312, 2
        %v314 = vadd.f32 %v312, %v313
        %v315 = vrot.slane %v314, 1
        %v316 = vadd.f32 %v314, %v315
        %vm317 = vcmp.eq.s32.totalorder %v171, 0
        %vm318 = vcmp.eq.s32.totalorder %v171, 1
        %vm319 = vcmp.eq.s32.totalorder %v171, 2
        %v320 = vsel %vm319, %v316, 0.0
        %v321 = vsel %vm318, %v309, %v320
        %v322 = vsel %vm317, %v302, %v321
        %323 = vst [vmem:[%s153] sm:$0xff] %v322
        %s324 = sand.u32 %s76, 1
        %s325 = scalar_lea.sflag [#allocation3], %s324
        %s326 = sand.u32 %s76, 1
        %s327 = smul.addr %s326, 8
        %s328 = scalar_lea.vmem [#allocation2], %s327
        // Predicated region
        $region29: #{tpu_custom_call.1} parent=27 // pred_check
          %p329 = pneg %p86
        $region30: #{tpu_custom_call.1} parent=27 // pred_check_branch
          %331 = sbr.rel (%p329) target = $region32
        $region31: #{tpu_custom_call.1} parent=27 // pred_region
          %333 = vsyncadd %s325, 0
          %s334 = smul.addr %s16, 8
          %s335 = scalar_lea.hbm %s2, %s334
          %s337 = sshll.u32 %s328, 4
          %s338 = int_to_ptr.vmem [resolvable:$true] %s337
          %s339 = sshll.u32 %s335, 4
          %s340 = int_to_ptr.hbm [resolvable:$true] %s339
          %342 = dma.vmem_to_hbm [thread:$0]  %s338, 128, %s340, %s325
        $region32: #{tpu_custom_call.1} parent=27 // pred_fallthru
          _
      $region28: #{tpu_custom_call.1} parent=5 // pred_fallthru
        _
      %p343 = scmp.le.s32.totalorder 2, %s11
      // Predicated region
      $region33: #{tpu_custom_call.1} parent=5 // pred_check
        %p344 = pneg %p343
      $region34: #{tpu_custom_call.1} parent=5 // pred_check_branch
        %346 = sbr.rel (%p344) target = $region36
      $region35: #{tpu_custom_call.1} parent=5 // pred_region
        %s347 = ssub.s32 %s11, 2
        // Predicated region
        $region37: #{tpu_custom_call.1} parent=35 // pred_check
          %p348 = pneg %p92
        $region38: #{tpu_custom_call.1} parent=35 // pred_check_branch
          %350 = sbr.rel (%p348) target = $region40
        $region39: #{tpu_custom_call.1} parent=35 // pred_region
          %s351 = sand.u32 %s77, 1
          %s352 = scalar_lea.sflag [#allocation3], %s351
          %s353 = sand.u32 %s77, 1
          %s354 = smul.addr %s353, 8
          %s355 = scalar_lea.vmem [#allocation2], %s354
          %357 = dma.done %s352, 128
        $region40: #{tpu_custom_call.1} parent=35 // pred_fallthru
          _
      $region36: #{tpu_custom_call.1} parent=5 // pred_fallthru
        _
    $region6: #{tpu_custom_call.1} parent=1 // loop_footer
      %s15 = sadd.s32 1, %s11
    $region7: #{tpu_custom_call.1} parent=1 // loop_footer_branch
      %10 = sbr.rel target = $region3
    $region8: #{tpu_custom_call.1} parent=1 // loop_exit
      _
    %358 = vsyncpa [#allocation3], 1
    %s359 = scalar_lea.sflag [#allocation3], 1
    %360 = vsyncpa %s359, 1

</llo_original>
